<compile_context>
chip_gen: v7x
topology: tpu7x:2x2x1
jax: 0.10.0
libtpu: 0.0.40
codegen_flags: <defaults>
</compile_context>

<pallas_src>
import math
from functools import partial

import jax
import jax.numpy as jnp
from jax.experimental import pallas as pl
from jax.experimental.pallas import tpu as pltpu

_LANE = 128


# ----------------------------------------------------------------------------
# Fused kernel
# ----------------------------------------------------------------------------
def _ca_kernel(x_ref, w1t_ref, w2t_ref, o_ref, sum_ref, max_ref,
               *, hw, ts, nb, ns):
    # x_ref  : (nb, C, ts)   one batch block, one spatial tile
    # w1t_ref: (C, Ch)       fc1 weight, transposed (applied as pooled @ w1t)
    # w2t_ref: (Ch, C)       fc2 weight, transposed
    # o_ref  : (nb, C)       sigmoid(channel attention) for this batch block
    # sum_ref/max_ref: (nb, C, 128) VMEM accumulators (persist across s)
    inv_hw = 1.0 / hw

    def epilogue(ssum, smax):                       # ssum/smax: (nb, C) f32
        avg = ssum * inv_hw
        pooled = jnp.concatenate([avg, smax], axis=0)           # (2nb, C)
        h = jnp.dot(pooled, w1t_ref[...].astype(jnp.float32),
                    preferred_element_type=jnp.float32)         # (2nb, Ch)
        h = jnp.maximum(h, 0.0)                                 # ReLU
        y = jnp.dot(h, w2t_ref[...].astype(jnp.float32),
                    preferred_element_type=jnp.float32)         # (2nb, C)
        logits = y[:nb] + y[nb:]                                # avg_out + max_out
        o_ref[...] = (1.0 / (1.0 + jnp.exp(-logits))).astype(o_ref.dtype)

    if ns == 1:
        # Single spatial tile: reduce it directly, no scratch, no masking.
        tile = x_ref[...].astype(jnp.float32)                   # (nb, C, hw)
        epilogue(jnp.sum(tile, axis=-1), jnp.max(tile, axis=-1))
        return

    # ---- streaming path: ts is a multiple of 128, ns > 1 ----
    s = pl.program_id(1)
    rem = hw - (ns - 1) * ts               # valid lanes in the last tile (1..ts)

    @pl.when(s == 0)
    def _init():
        sum_ref[...] = jnp.zeros(sum_ref.shape, jnp.float32)
        max_ref[...] = jnp.full(max_ref.shape, -jnp.inf, jnp.float32)

    def fold_tile(n_valid):
        """Fold this tile's lanes into the (nb, C, 128) accumulators (VPU only).

        n_valid (static): number of valid lanes in the tile.  Slabs that are
        entirely past n_valid are skipped; at most one slab is lane-masked.
        """
        n_slabs = pl.cdiv(n_valid, _LANE)
        psum = None
        pmax = None
        for j in range(n_slabs):
            sl = x_ref[:, :, j * _LANE:(j + 1) * _LANE].astype(jnp.float32)
            lo = j * _LANE
            if lo + _LANE <= n_valid:
                sl_s, sl_m = sl, sl
            else:
                lane = jax.lax.broadcasted_iota(jnp.int32, (1, 1, _LANE), 2)
                ok = lane < (n_valid - lo)
                sl_s = jnp.where(ok, sl, 0.0)
                sl_m = jnp.where(ok, sl, -jnp.inf)
            psum = sl_s if psum is None else psum + sl_s
            pmax = sl_m if pmax is None else jnp.maximum(pmax, sl_m)
        sum_ref[...] += psum
        max_ref[...] = jnp.maximum(max_ref[...], pmax)

    if rem == ts:
        # hw % ts == 0: every tile is full, no masking anywhere.
        fold_tile(ts)
    else:
        @pl.when(s < ns - 1)
        def _full():
            fold_tile(ts)

        @pl.when(s == ns - 1)
        def _tail():
            fold_tile(rem)

    @pl.when(s == ns - 1)
    def _finish():
        # Single cross-lane (XLU) reduce per batch block, then the tiny FCs.
        epilogue(jnp.sum(sum_ref[...], axis=-1),
                 jnp.max(max_ref[...], axis=-1))


# ----------------------------------------------------------------------------
# Wrapper
# ----------------------------------------------------------------------------
def channel_attention(x_nchw, w1, w2, *, spatial_tile=8192, batch_block=None):
    """x_nchw: (N, C, H, W). w1: (C//r, C). w2: (C, C//r). Returns (N, C, 1, 1)."""
    n, c, h, w = x_nchw.shape
    ch = w1.shape[0]
    hw = h * w
    x = x_nchw.reshape(n, c, hw)          # trailing-dim collapse: no data movement
    w1t = jnp.transpose(w1)               # (C, Ch)   tiny, one-time
    w2t = jnp.transpose(w2)               # (Ch, C)

    # Batch blocking: amortize per-grid-step overhead when HW is small.  Cap
    # nb*C around 256 rows so the per-tile fold keeps vreg pressure bounded.
    if batch_block is None:
        nb = max(1, min(n, max(1, 256 // c), 8))
    else:
        nb = max(1, min(int(batch_block), n))

    # Spatial tile: multiple of 128, sized to a ~8 MiB double-buffered budget
    # (safe on v7x's smaller VMEM, still deep enough to hit the HBM roofline).
    itemsize = jnp.dtype(x.dtype).itemsize
    bytes_per_lane = 2 * nb * c * itemsize          # double-buffered input
    ts_cap = max(_LANE, ((8 << 20) // max(bytes_per_lane, 1)) // _LANE * _LANE)
    ts_target = min(max(_LANE, (spatial_tile // _LANE) * _LANE), ts_cap)
    if hw <= ts_target:
        ts, grid_s = hw, 1                # full extent: one tile, no masking
    else:
        ts, grid_s = ts_target, pl.cdiv(hw, ts_target)
    grid_b = pl.cdiv(n, nb)

    est = (2 * nb * c * ts * itemsize          # double-buffered input
           + 4 * c * ch * 4                    # weights (x2 buffers)
           + 2 * nb * c * 4                    # output block
           + 2 * nb * c * _LANE * 4            # accumulators
           + (2 << 20))                        # headroom
    vmem_limit = int(min(48 << 20, max(16 << 20, est)))

    out = pl.pallas_call(
        partial(_ca_kernel, hw=hw, ts=ts, nb=nb, ns=grid_s),
        out_shape=jax.ShapeDtypeStruct((n, c), jnp.float32),
        grid_spec=pltpu.PrefetchScalarGridSpec(
            num_scalar_prefetch=0,
            grid=(grid_b, grid_s),
            in_specs=[
                pl.BlockSpec((nb, c, ts), lambda b, s: (b, 0, s)),
                pl.BlockSpec((c, ch), lambda b, s: (0, 0)),
                pl.BlockSpec((ch, c), lambda b, s: (0, 0)),
            ],
            out_specs=pl.BlockSpec((nb, c), lambda b, s: (b, 0)),
            scratch_shapes=[
                pltpu.VMEM((nb, c, _LANE), jnp.float32),   # running sum slabs
                pltpu.VMEM((nb, c, _LANE), jnp.float32),   # running max slabs
            ],
        ),
        compiler_params=pltpu.CompilerParams(
            dimension_semantics=("parallel", "arbitrary"),
            vmem_limit_bytes=vmem_limit,
        ),
    )(x, w1t, w2t)
    return out.reshape(n, c, 1, 1)


# ----------------------------------------------------------------------------
# Pure-JAX reference (mirrors the PyTorch module)
# ----------------------------------------------------------------------------
def channel_attention_ref(x, w1, w2):
    n, c, _, _ = x.shape
    avg = jnp.mean(x, axis=(2, 3))        # (N, C)
    mx = jnp.max(x, axis=(2, 3))          # (N, C)

    def fc(v):
        return jnp.maximum(v @ w1.T, 0.0) @ w2.T

    return jax.nn.sigmoid(fc(avg) + fc(mx)).reshape(n, c, 1, 1)


if __name__ == "__main__":
    key = jax.random.PRNGKey(0)
    kx, k1, k2, kx2 = jax.random.split(key, 4)

    N, C, H, W, RATIO = 2, 64, 16, 16, 16
    CH = C // RATIO                       # 4

    x = jax.random.normal(kx, (N, C, H, W), jnp.float32)
    # fc1/fc2 weights in their PyTorch Conv2d-1x1 (squeezed) shapes.
    w1 = jax.random.normal(k1, (CH, C), jnp.float32) * math.sqrt(2.0 / C)
    w2 = jax.random.normal(k2, (C, CH), jnp.float32) * math.sqrt(2.0 / CH)

    # Small demo shape: single-tile fast path, 2 batch elements per grid step.
    out = jax.block_until_ready(jax.jit(channel_attention)(x, w1, w2))
    ref = channel_attention_ref(x, w1, w2)
    assert out.shape == (N, C, 1, 1), out.shape
    assert bool(jnp.all(jnp.isfinite(out)))
    assert bool(jnp.allclose(out, ref, atol=1e-5, rtol=1e-5)), (
        float(jnp.max(jnp.abs(out - ref))))

    # Also exercise the multi-tile streaming path (masked partial last spatial
    # tile and a partial last batch block).
    x2 = jax.random.normal(kx2, (3, C, 40, 40), jnp.float32)
    fwd2 = jax.jit(partial(channel_attention, spatial_tile=512, batch_block=2))
    out2 = jax.block_until_ready(fwd2(x2, w1, w2))
    ref2 = channel_attention_ref(x2, w1, w2)
    assert bool(jnp.allclose(out2, ref2, atol=1e-5, rtol=1e-5)), (
        float(jnp.max(jnp.abs(out2 - ref2))))

    print("KERNEL_OK")
</pallas_src>

<mosaic_0001>
module attributes {stable_mosaic.version = 11 : i64} {
  func.func @_ca_kernel(%arg0: i32, %arg1: i32, %arg2: memref<2x64x256xf32, #tpu.memory_space<vmem>>, %arg3: memref<64x4xf32, #tpu.memory_space<vmem>>, %arg4: memref<4x64xf32, #tpu.memory_space<vmem>>, %arg5: memref<2x64xf32, #tpu.memory_space<vmem>>, %arg6: memref<2x64x128xf32, #tpu.memory_space<vmem>>, %arg7: memref<2x64x128xf32, #tpu.memory_space<vmem>>) attributes {dimension_semantics = [#tpu.dimension_semantics<parallel>, #tpu.dimension_semantics<arbitrary>], iteration_bounds = array<i64: 1, 1>, scalar_prefetch = 0 : i64, scratch_operands = 2 : i64, tpu.core_type = #tpu.core_type<tc>, window_params = [{transform_indices = @transform_0, window_bounds = array<i64: 2, 64, 256>}, {pipeline_mode = #tpu.pipeline_mode<synchronous>, transform_indices = @transform_1, window_bounds = array<i64: 64, 4>}, {pipeline_mode = #tpu.pipeline_mode<synchronous>, transform_indices = @transform_2, window_bounds = array<i64: 4, 64>}, {transform_indices = @transform_3, window_bounds = array<i64: 2, 64>}]} {
    %c0 = arith.constant 0 : index
    %c0_0 = arith.constant 0 : index
    %c0_1 = arith.constant 0 : index
    %0 = vector.load %arg2[%c0, %c0_0, %c0_1] : memref<2x64x256xf32, #tpu.memory_space<vmem>>, vector<2x64x256xf32>
    %cst = arith.constant dense<0.000000e+00> : vector<2x64xf32>
    %1 = vector.multi_reduction <add>, %0, %cst [2] : vector<2x64x256xf32> to vector<2x64xf32>
    %cst_2 = arith.constant dense<0xFF800000> : vector<2x64xf32>
    %2 = vector.multi_reduction <maximumf>, %0, %cst_2 [2] : vector<2x64x256xf32> to vector<2x64xf32>
    %cst_3 = arith.constant 3.906250e-03 : f32
    %3 = vector.broadcast %cst_3 : f32 to vector<2x64xf32>
    %4 = arith.mulf %1, %3 : vector<2x64xf32>
    %5 = tpu.concatenate %4, %2 in 0 : vector<2x64xf32>, vector<2x64xf32> -> vector<4x64xf32>
    %c0_4 = arith.constant 0 : index
    %c0_5 = arith.constant 0 : index
    %6 = vector.load %arg3[%c0_4, %c0_5] : memref<64x4xf32, #tpu.memory_space<vmem>>, vector<64x4xf32>
    %cst_6 = arith.constant dense<0.000000e+00> : vector<4x4xf32>
    %7 = tpu.matmul %5, %6, %cst_6 {dimension_numbers = #tpu.dot_dimension_numbers<[1], [0], [0], [1], [0, 0, 1, 1], [], []>} : vector<4x64xf32>, vector<64x4xf32>, vector<4x4xf32> -> vector<4x4xf32>
    %cst_7 = arith.constant 0.000000e+00 : f32
    %8 = vector.broadcast %cst_7 : f32 to vector<4x4xf32>
    %9 = arith.maximumf %7, %8 : vector<4x4xf32>
    %c0_8 = arith.constant 0 : index
    %c0_9 = arith.constant 0 : index
    %10 = vector.load %arg4[%c0_8, %c0_9] : memref<4x64xf32, #tpu.memory_space<vmem>>, vector<4x64xf32>
    %cst_10 = arith.constant dense<0.000000e+00> : vector<4x64xf32>
    %11 = tpu.matmul %9, %10, %cst_10 {dimension_numbers = #tpu.dot_dimension_numbers<[1], [0], [0], [1], [0, 0, 1, 1], [], []>} : vector<4x4xf32>, vector<4x64xf32>, vector<4x64xf32> -> vector<4x64xf32>
    %12 = vector.extract_strided_slice %11 {offsets = [0, 0], sizes = [2, 64], strides = [1, 1]} : vector<4x64xf32> to vector<2x64xf32>
    %13 = vector.extract_strided_slice %11 {offsets = [2, 0], sizes = [2, 64], strides = [1, 1]} : vector<4x64xf32> to vector<2x64xf32>
    %14 = arith.addf %12, %13 : vector<2x64xf32>
    %cst_11 = arith.constant 0.000000e+00 : f32
    %15 = vector.broadcast %cst_11 : f32 to vector<2x64xf32>
    %16 = arith.subf %15, %14 : vector<2x64xf32>
    %17 = math.exp %16 : vector<2x64xf32>
    %cst_12 = arith.constant 1.000000e+00 : f32
    %18 = vector.broadcast %cst_12 : f32 to vector<2x64xf32>
    %19 = arith.addf %18, %17 : vector<2x64xf32>
    %cst_13 = arith.constant 1.000000e+00 : f32
    %20 = vector.broadcast %cst_13 : f32 to vector<2x64xf32>
    %21 = arith.divf %20, %19 : vector<2x64xf32>
    %c0_14 = arith.constant 0 : index
    %c0_15 = arith.constant 0 : index
    %22 = vector.load %arg5[%c0_14, %c0_15] : memref<2x64xf32, #tpu.memory_space<vmem>>, vector<2x64xf32>
    tpu.vector_store %arg5[%c0_14, %c0_15], %21 {strides = array<i32>} : memref<2x64xf32, #tpu.memory_space<vmem>>, vector<2x64xf32>,
    return
  }
  func.func @transform_0(%arg0: i32, %arg1: i32) -> (i32, i32, i32) {
    %c0_i32 = arith.constant 0 : i32
    %c0_i32_0 = arith.constant 0 : i32
    return %arg0, %c0_i32, %arg1 : i32, i32, i32
  }
  func.func @transform_1(%arg0: i32, %arg1: i32) -> (i32, i32) {
    %c0_i32 = arith.constant 0 : i32
    %c0_i32_0 = arith.constant 0 : i32
    %c0_i32_1 = arith.constant 0 : i32
    return %c0_i32, %c0_i32_0 : i32, i32
  }
  func.func @transform_2(%arg0: i32, %arg1: i32) -> (i32, i32) {
    %c0_i32 = arith.constant 0 : i32
    %c0_i32_0 = arith.constant 0 : i32
    %c0_i32_1 = arith.constant 0 : i32
    return %c0_i32, %c0_i32_0 : i32, i32
  }
  func.func @transform_3(%arg0: i32, %arg1: i32) -> (i32, i32) {
    %c0_i32 = arith.constant 0 : i32
    %c0_i32_0 = arith.constant 0 : i32
    return %arg0, %c0_i32 : i32, i32
  }
}

</mosaic_0001>

<llo_original>
// kernel: channel_attention.1
$region0: #{channel_attention.1}
  #allocation0 [shape = 'u32[]', space=smem, size = 0x4, offset = 0x4, fixed_abs, tag = 'smem constant byte address 0x4 - core index']
  #allocation1 [shape = 'u32[144,128]{1,0:T(1,128)}', space=vmem, size = 0x12000, scoped, tag = 'internal scratch']
  #allocation2 [shape = 'f32[2,64,128]{2,1,0:T(8,128)}', space=vmem, size = 0x10000, scoped, tag = 'scratch operand']
  #allocation3 [shape = 'f32[2,64,128]{2,1,0:T(8,128)}', space=vmem, size = 0x10000, scoped, tag = 'scratch operand']
  %s0 = inlined_call_operand.vmem [shape: f32[2,64,256], index: 0, kind: input, shape index: {}]
  %s1 = inlined_call_operand.vmem [shape: f32[64,4], index: 1, kind: input, shape index: {}]
  %s2 = inlined_call_operand.vmem [shape: f32[4,64], index: 2, kind: input, shape index: {}]
  %s3 = inlined_call_operand.hbm [shape: f32[2,64], index: 3, kind: output, shape index: {}]
  %s4 = sld [smem:[#allocation0]]
  $region22: #{channel_attention.1} parent=0
    _
  %s6 = ssub.s32 1, %s4
  %s7 = scalar_select 0, %s6, %s4
  $region1: #{channel_attention.1} parent=0
    #allocation4 [shape = 'u8[1024]{0}', space=vmem, size = 0x400, scoped, tag = 'output window, operand 0, single buffered']
    #allocation5 [shape = 's32[1]{0}', space=sflag, size = 0x4, scoped, tag = 'scoped memory for channel_attention.1']
    %8 = vsyncpa [#allocation5], 0
    // Predicated region
    $region2: #{channel_attention.1} parent=1 // pred_check
      _
    $region3: #{channel_attention.1} parent=1 // pred_check_branch
      %10 = sbr.rel (0) target = $region5
    $region4: #{channel_attention.1} parent=1 // pred_region
      _
    $region5: #{channel_attention.1} parent=1 // pred_fallthru
      _
    // Predicated region
    $region6: #{channel_attention.1} parent=1 // pred_check
      _
    $region7: #{channel_attention.1} parent=1 // pred_check_branch
      %12 = sbr.rel (0) target = $region9
    $region8: #{channel_attention.1} parent=1 // pred_region
      _
    $region9: #{channel_attention.1} parent=1 // pred_fallthru
      _
    // Predicated region
    $region10: #{channel_attention.1} parent=1 // pred_check
      _
    $region11: #{channel_attention.1} parent=1 // pred_check_branch
      %14 = sbr.rel (0) target = $region13
    $region12: #{channel_attention.1} parent=1 // pred_region
      _
    $region13: #{channel_attention.1} parent=1 // pred_fallthru
      _
    %v15 = vld [vmem:[%s0] sm:$0xff]
    %v16 = vld [vmem:[%s0 + $0x8] sm:$0xff]
    %v17 = vld [vmem:[%s0 + $0x10] sm:$0xff]
    %v18 = vld [vmem:[%s0 + $0x18] sm:$0xff]
    %v19 = vld [vmem:[%s0 + $0x20] sm:$0xff]
    %v20 = vld [vmem:[%s0 + $0x28] sm:$0xff]
    %v21 = vld [vmem:[%s0 + $0x30] sm:$0xff]
    %v22 = vld [vmem:[%s0 + $0x38] sm:$0xff]
    %v23 = vld [vmem:[%s0 + $0x40] sm:$0xff]
    %v24 = vld [vmem:[%s0 + $0x48] sm:$0xff]
    %v25 = vld [vmem:[%s0 + $0x50] sm:$0xff]
    %v26 = vld [vmem:[%s0 + $0x58] sm:$0xff]
    %v27 = vld [vmem:[%s0 + $0x60] sm:$0xff]
    %v28 = vld [vmem:[%s0 + $0x68] sm:$0xff]
    %v29 = vld [vmem:[%s0 + $0x70] sm:$0xff]
    %v30 = vld [vmem:[%s0 + $0x78] sm:$0xff]
    %v31 = vld [vmem:[%s0 + $0x80] sm:$0xff]
    %v32 = vld [vmem:[%s0 + $0x88] sm:$0xff]
    %v33 = vld [vmem:[%s0 + $0x90] sm:$0xff]
    %v34 = vld [vmem:[%s0 + $0x98] sm:$0xff]
    %v35 = vld [vmem:[%s0 + $0xa0] sm:$0xff]
    %v36 = vld [vmem:[%s0 + $0xa8] sm:$0xff]
    %v37 = vld [vmem:[%s0 + $0xb0] sm:$0xff]
    %v38 = vld [vmem:[%s0 + $0xb8] sm:$0xff]
    %v39 = vld [vmem:[%s0 + $0xc0] sm:$0xff]
    %v40 = vld [vmem:[%s0 + $0xc8] sm:$0xff]
    %v41 = vld [vmem:[%s0 + $0xd0] sm:$0xff]
    %v42 = vld [vmem:[%s0 + $0xd8] sm:$0xff]
    %v43 = vld [vmem:[%s0 + $0xe0] sm:$0xff]
    %v44 = vld [vmem:[%s0 + $0xe8] sm:$0xff]
    %v45 = vld [vmem:[%s0 + $0xf0] sm:$0xff]
    %v46 = vld [vmem:[%s0 + $0xf8] sm:$0xff]
    %v47 = vadd.f32 %v15, %v16
    %48 = vadd.xlane.f32.xlu0 %v47
    %v49 = vpop.xlane.xlu0 %48
    %v50 = vadd.f32 %v17, %v18
    %51 = vadd.xlane.f32.xlu0 %v50
    %v52 = vpop.xlane.xlu0 %51
    %v53 = vadd.f32 %v19, %v20
    %54 = vadd.xlane.f32.xlu0 %v53
    %v55 = vpop.xlane.xlu0 %54
    %v56 = vadd.f32 %v21, %v22
    %57 = vadd.xlane.f32.xlu0 %v56
    %v58 = vpop.xlane.xlu0 %57
    %v59 = vadd.f32 %v23, %v24
    %60 = vadd.xlane.f32.xlu0 %v59
    %v61 = vpop.xlane.xlu0 %60
    %v62 = vadd.f32 %v25, %v26
    %63 = vadd.xlane.f32.xlu0 %v62
    %v64 = vpop.xlane.xlu0 %63
    %v65 = vadd.f32 %v27, %v28
    %66 = vadd.xlane.f32.xlu0 %v65
    %v67 = vpop.xlane.xlu0 %66
    %v68 = vadd.f32 %v29, %v30
    %69 = vadd.xlane.f32.xlu0 %v68
    %v70 = vpop.xlane.xlu0 %69
    %v71 = vadd.f32 %v31, %v32
    %72 = vadd.xlane.f32.xlu0 %v71
    %v73 = vpop.xlane.xlu0 %72
    %v74 = vadd.f32 %v33, %v34
    %75 = vadd.xlane.f32.xlu0 %v74
    %v76 = vpop.xlane.xlu0 %75
    %v77 = vadd.f32 %v35, %v36
    %78 = vadd.xlane.f32.xlu0 %v77
    %v79 = vpop.xlane.xlu0 %78
    %v80 = vadd.f32 %v37, %v38
    %81 = vadd.xlane.f32.xlu0 %v80
    %v82 = vpop.xlane.xlu0 %81
    %v83 = vadd.f32 %v39, %v40
    %84 = vadd.xlane.f32.xlu0 %v83
    %v85 = vpop.xlane.xlu0 %84
    %v86 = vadd.f32 %v41, %v42
    %87 = vadd.xlane.f32.xlu0 %v86
    %v88 = vpop.xlane.xlu0 %87
    %v89 = vadd.f32 %v43, %v44
    %90 = vadd.xlane.f32.xlu0 %v89
    %v91 = vpop.xlane.xlu0 %90
    %v92 = vadd.f32 %v45, %v46
    %93 = vadd.xlane.f32.xlu0 %v92
    %v94 = vpop.xlane.xlu0 %93
    %v95 = vmax.f32 %v15, %v16
    %96 = vmax.xlane.f32.xlu0 %v95
    %v97 = vpop.xlane.xlu0 %96
    %v98 = vmax.f32 %v17, %v18
    %99 = vmax.xlane.f32.xlu0 %v98
    %v100 = vpop.xlane.xlu0 %99
    %v101 = vmax.f32 %v19, %v20
    %102 = vmax.xlane.f32.xlu0 %v101
    %v103 = vpop.xlane.xlu0 %102
    %v104 = vmax.f32 %v21, %v22
    %105 = vmax.xlane.f32.xlu0 %v104
    %v106 = vpop.xlane.xlu0 %105
    %v107 = vmax.f32 %v23, %v24
    %108 = vmax.xlane.f32.xlu0 %v107
    %v109 = vpop.xlane.xlu0 %108
    %v110 = vmax.f32 %v25, %v26
    %111 = vmax.xlane.f32.xlu0 %v110
    %v112 = vpop.xlane.xlu0 %111
    %v113 = vmax.f32 %v27, %v28
    %114 = vmax.xlane.f32.xlu0 %v113
    %v115 = vpop.xlane.xlu0 %114
    %v116 = vmax.f32 %v29, %v30
    %117 = vmax.xlane.f32.xlu0 %v116
    %v118 = vpop.xlane.xlu0 %117
    %v119 = vmax.f32 %v31, %v32
    %120 = vmax.xlane.f32.xlu0 %v119
    %v121 = vpop.xlane.xlu0 %120
    %v122 = vmax.f32 %v33, %v34
    %123 = vmax.xlane.f32.xlu0 %v122
    %v124 = vpop.xlane.xlu0 %123
    %v125 = vmax.f32 %v35, %v36
    %126 = vmax.xlane.f32.xlu0 %v125
    %v127 = vpop.xlane.xlu0 %126
    %v128 = vmax.f32 %v37, %v38
    %129 = vmax.xlane.f32.xlu0 %v128
    %v130 = vpop.xlane.xlu0 %129
    %v131 = vmax.f32 %v39, %v40
    %132 = vmax.xlane.f32.xlu0 %v131
    %v133 = vpop.xlane.xlu0 %132
    %v134 = vmax.f32 %v41, %v42
    %135 = vmax.xlane.f32.xlu0 %v134
    %v136 = vpop.xlane.xlu0 %135
    %v137 = vmax.f32 %v43, %v44
    %138 = vmax.xlane.f32.xlu0 %v137
    %v139 = vpop.xlane.xlu0 %138
    %v140 = vmax.f32 %v45, %v46
    %141 = vmax.xlane.f32.xlu0 %v140
    %v142 = vpop.xlane.xlu0 %141
    %v143 = vmul.f32 %v49, 0.00390625
    %v144 = vmul.f32 %v52, 0.00390625
    %v145 = vmul.f32 %v55, 0.00390625
    %v146 = vmul.f32 %v58, 0.00390625
    %v147 = vmul.f32 %v61, 0.00390625
    %v148 = vmul.f32 %v64, 0.00390625
    %v149 = vmul.f32 %v67, 0.00390625
    %v150 = vmul.f32 %v70, 0.00390625
    %v151 = vmul.f32 %v73, 0.00390625
    %v152 = vmul.f32 %v76, 0.00390625
    %v153 = vmul.f32 %v79, 0.00390625
    %v154 = vmul.f32 %v82, 0.00390625
    %v155 = vmul.f32 %v85, 0.00390625
    %v156 = vmul.f32 %v88, 0.00390625
    %v157 = vmul.f32 %v91, 0.00390625
    %v158 = vmul.f32 %v94, 0.00390625
    %v175 = vlaneseq
    %v176 = vand.u32 %v175, 127
    %v177 = vlaneseq
    %v178 = vshrl.u32 %v177, 7
    %v179 = vsub.s32 %v176, %v178
    %v180 = vrot.slane %v143, %v179
    %v181 = vadd.s32 %v176, 4294967288
    %v182 = vlaneseq
    %v183 = vshrl.u32 %v182, 7
    %v184 = vsub.s32 %v181, %v183
    %v185 = vrot.slane %v144, %v184
    %vm186 = vcmask 130112
    %v187 = vsel %vm186, %v185, %v180
    %v188 = vadd.s32 %v176, 4294967280
    %v189 = vlaneseq
    %v190 = vshrl.u32 %v189, 7
    %v191 = vsub.s32 %v188, %v190
    %v192 = vrot.slane %v145, %v191
    %vm193 = vcmask 195712
    %v194 = vsel %vm193, %v192, %v187
    %v195 = vadd.s32 %v176, 4294967272
    %v196 = vlaneseq
    %v197 = vshrl.u32 %v196, 7
    %v198 = vsub.s32 %v195, %v197
    %v199 = vrot.slane %v146, %v198
    %vm200 = vcmask 261312
    %v201 = vsel %vm200, %v199, %v194
    %v202 = vadd.s32 %v176, 4294967264
    %v203 = vlaneseq
    %v204 = vshrl.u32 %v203, 7
    %v205 = vsub.s32 %v202, %v204
    %v206 = vrot.slane %v147, %v205
    %vm207 = vcmask 326912
    %v208 = vsel %vm207, %v206, %v201
    %v209 = vadd.s32 %v176, 4294967256
    %v210 = vlaneseq
    %v211 = vshrl.u32 %v210, 7
    %v212 = vsub.s32 %v209, %v211
    %v213 = vrot.slane %v148, %v212
    %vm214 = vcmask 392512
    %v215 = vsel %vm214, %v213, %v208
    %v216 = vadd.s32 %v176, 4294967248
    %v217 = vlaneseq
    %v218 = vshrl.u32 %v217, 7
    %v219 = vsub.s32 %v216, %v218
    %v220 = vrot.slane %v149, %v219
    %vm221 = vcmask 458112
    %v222 = vsel %vm221, %v220, %v215
    %v223 = vadd.s32 %v176, 4294967240
    %v224 = vlaneseq
    %v225 = vshrl.u32 %v224, 7
    %v226 = vsub.s32 %v223, %v225
    %v227 = vrot.slane %v150, %v226
    %vm228 = vcmask 523712
    %v229 = vsel %vm228, %v227, %v222
    %v230 = vlaneseq
    %v231 = vshrl.u32 %v230, 7
    %v232 = vsub.s32 %v176, %v231
    %v233 = vrot.slane %v151, %v232
    %v234 = vlaneseq
    %v235 = vshrl.u32 %v234, 7
    %v236 = vsub.s32 %v181, %v235
    %v237 = vrot.slane %v152, %v236
    %v238 = vsel %vm186, %v237, %v233
    %v239 = vlaneseq
    %v240 = vshrl.u32 %v239, 7
    %v241 = vsub.s32 %v188, %v240
    %v242 = vrot.slane %v153, %v241
    %v243 = vsel %vm193, %v242, %v238
    %v244 = vlaneseq
    %v245 = vshrl.u32 %v244, 7
    %v246 = vsub.s32 %v195, %v245
    %v247 = vrot.slane %v154, %v246
    %v248 = vsel %vm200, %v247, %v243
    %v249 = vlaneseq
    %v250 = vshrl.u32 %v249, 7
    %v251 = vsub.s32 %v202, %v250
    %v252 = vrot.slane %v155, %v251
    %v253 = vsel %vm207, %v252, %v248
    %v254 = vlaneseq
    %v255 = vshrl.u32 %v254, 7
    %v256 = vsub.s32 %v209, %v255
    %v257 = vrot.slane %v156, %v256
    %v258 = vsel %vm214, %v257, %v253
    %v259 = vlaneseq
    %v260 = vshrl.u32 %v259, 7
    %v261 = vsub.s32 %v216, %v260
    %v262 = vrot.slane %v157, %v261
    %v263 = vsel %vm221, %v262, %v258
    %v264 = vlaneseq
    %v265 = vshrl.u32 %v264, 7
    %v266 = vsub.s32 %v223, %v265
    %v267 = vrot.slane %v158, %v266
    %v268 = vsel %vm228, %v267, %v263
    %vm269 = vcmask 1041409
    %v270 = vsel %vm269, %v268, %v229
    %v288 = vlaneseq
    %v289 = vshrl.u32 %v288, 7
    %v290 = vsub.s32 %v176, %v289
    %v291 = vrot.slane %v97, %v290
    %v292 = vlaneseq
    %v293 = vshrl.u32 %v292, 7
    %v294 = vsub.s32 %v181, %v293
    %v295 = vrot.slane %v100, %v294
    %v296 = vsel %vm186, %v295, %v291
    %v297 = vlaneseq
    %v298 = vshrl.u32 %v297, 7
    %v299 = vsub.s32 %v188, %v298
    %v300 = vrot.slane %v103, %v299
    %v301 = vsel %vm193, %v300, %v296
    %v302 = vlaneseq
    %v303 = vshrl.u32 %v302, 7
    %v304 = vsub.s32 %v195, %v303
    %v305 = vrot.slane %v106, %v304
    %v306 = vsel %vm200, %v305, %v301
    %v307 = vlaneseq
    %v308 = vshrl.u32 %v307, 7
    %v309 = vsub.s32 %v202, %v308
    %v310 = vrot.slane %v109, %v309
    %v311 = vsel %vm207, %v310, %v306
    %v312 = vlaneseq
    %v313 = vshrl.u32 %v312, 7
    %v314 = vsub.s32 %v209, %v313
    %v315 = vrot.slane %v112, %v314
    %v316 = vsel %vm214, %v315, %v311
    %v317 = vlaneseq
    %v318 = vshrl.u32 %v317, 7
    %v319 = vsub.s32 %v216, %v318
    %v320 = vrot.slane %v115, %v319
    %v321 = vsel %vm221, %v320, %v316
    %v322 = vlaneseq
    %v323 = vshrl.u32 %v322, 7
    %v324 = vsub.s32 %v223, %v323
    %v325 = vrot.slane %v118, %v324
    %v326 = vsel %vm228, %v325, %v321
    %v327 = vlaneseq
    %v328 = vshrl.u32 %v327, 7
    %v329 = vsub.s32 %v176, %v328
    %v330 = vrot.slane %v121, %v329
    %v331 = vlaneseq
    %v332 = vshrl.u32 %v331, 7
    %v333 = vsub.s32 %v181, %v332
    %v334 = vrot.slane %v124, %v333
    %v335 = vsel %vm186, %v334, %v330
    %v336 = vlaneseq
    %v337 = vshrl.u32 %v336, 7
    %v338 = vsub.s32 %v188, %v337
    %v339 = vrot.slane %v127, %v338
    %v340 = vsel %vm193, %v339, %v335
    %v341 = vlaneseq
    %v342 = vshrl.u32 %v341, 7
    %v343 = vsub.s32 %v195, %v342
    %v344 = vrot.slane %v130, %v343
    %v345 = vsel %vm200, %v344, %v340
    %v346 = vlaneseq
    %v347 = vshrl.u32 %v346, 7
    %v348 = vsub.s32 %v202, %v347
    %v349 = vrot.slane %v133, %v348
    %v350 = vsel %vm207, %v349, %v345
    %v351 = vlaneseq
    %v352 = vshrl.u32 %v351, 7
    %v353 = vsub.s32 %v209, %v352
    %v354 = vrot.slane %v136, %v353
    %v355 = vsel %vm214, %v354, %v350
    %v356 = vlaneseq
    %v357 = vshrl.u32 %v356, 7
    %v358 = vsub.s32 %v216, %v357
    %v359 = vrot.slane %v139, %v358
    %v360 = vsel %vm221, %v359, %v355
    %v361 = vlaneseq
    %v362 = vshrl.u32 %v361, 7
    %v363 = vsub.s32 %v223, %v362
    %v364 = vrot.slane %v142, %v363
    %v365 = vsel %vm228, %v364, %v360
    %vm366 = vcmask 1043459
    %v367 = vsel %vm366, %v365, %v326
    %vm369 = vcmask 1041408
    %v370 = vsel %vm369, %v270, %v367
    %v371 = vld [vmem:[%s1] sm:$0xff]
    %v372 = vld [vmem:[%s1 + $0x8] sm:$0xff]
    %v373 = vld [vmem:[%s1 + $0x10] sm:$0xff]
    %v374 = vld [vmem:[%s1 + $0x18] sm:$0xff]
    %v375 = vld [vmem:[%s1 + $0x20] sm:$0xff]
    %v376 = vld [vmem:[%s1 + $0x28] sm:$0xff]
    %v377 = vld [vmem:[%s1 + $0x30] sm:$0xff]
    %v378 = vld [vmem:[%s1 + $0x38] sm:$0xff]
    %vm379 = vcmask 523264
    %v381 = vsel %vm379, %v370, 0
    %383 = vmatprep.subr.mxu0 0.0
    %384 = vmatpush1.msra.mxu0 %v371
    %385 = vmatprep.subr.mxu0 0.0
    %386 = vmatpush1.msra.mxu0 %v372
    %387 = vmatprep.subr.mxu0 0.0
    %388 = vmatpush1.msra.mxu0 %v373
    %389 = vmatprep.subr.mxu0 0.0
    %390 = vmatpush1.msra.mxu0 %v374
    %391 = vmatprep.subr.mxu0 0.0
    %392 = vmatpush1.msra.mxu0 %v375
    %393 = vmatprep.subr.mxu0 0.0
    %394 = vmatpush1.msra.mxu0 %v376
    %395 = vmatprep.subr.mxu0 0.0
    %396 = vmatpush1.msra.mxu0 %v377
    %397 = vmatprep.subr.mxu0 0.0
    %398 = vmatpush1.msra.mxu0 %v378
    %399 = vmatprep.subr.mxu0 0.0
    %400 = vmatpush1.msra.mxu0 0.0
    %401 = vmatprep.subr.mxu0 0.0
    %402 = vmatpush1.msra.mxu0 0.0
    %403 = vmatprep.subr.mxu0 0.0
    %404 = vmatpush1.msra.mxu0 0.0
    %405 = vmatprep.subr.mxu0 0.0
    %406 = vmatpush1.msra.mxu0 0.0
    %407 = vmatprep.subr.mxu0 0.0
    %408 = vmatpush1.msra.mxu0 0.0
    %409 = vmatprep.subr.mxu0 0.0
    %410 = vmatpush1.msra.mxu0 0.0
    %411 = vmatprep.subr.mxu0 0.0
    %412 = vmatpush1.msra.mxu0 0.0
    %413 = vmatprep.subr.mxu0 0.0
    %414 = vmatpush1.msra.mxu0 0.0
    %415 = vmatprep.subr.mxu0 0.0
    %416 = vmatpush1.msra.mxu0 0.0
    %417 = vmatprep.subr.mxu0 0.0
    %418 = vmatpush1.msra.mxu0 0.0
    %419 = vmatprep.subr.mxu0 0.0
    %420 = vmatpush1.msra.mxu0 0.0
    %421 = vmatprep.subr.mxu0 0.0
    %422 = vmatpush1.msra.mxu0 0.0
    %423 = vmatprep.subr.mxu0 0.0
    %424 = vmatpush1.msra.mxu0 0.0
    %425 = vmatprep.subr.mxu0 0.0
    %426 = vmatpush1.msra.mxu0 0.0
    %427 = vmatprep.subr.mxu0 0.0
    %428 = vmatpush1.msra.mxu0 0.0
    %429 = vmatprep.subr.mxu0 0.0
    %430 = vmatpush1.msra.mxu0 0.0
    %431 = vmatprep.subr.mxu0 0.0
    %432 = vmatpush1.msra.mxu0 0.0
    %433 = vmatprep.subr.mxu0 0.0
    %434 = vmatpush1.msra.mxu0 0.0
    %435 = vmatprep.subr.mxu0 0.0
    %436 = vmatpush1.msra.mxu0 0.0
    %437 = vmatprep.subr.mxu0 0.0
    %438 = vmatpush1.msra.mxu0 0.0
    %439 = vmatprep.subr.mxu0 0.0
    %440 = vmatpush1.msra.mxu0 0.0
    %441 = vmatprep.subr.mxu0 0.0
    %442 = vmatpush1.msra.mxu0 0.0
    %443 = vmatprep.subr.mxu0 0.0
    %444 = vmatpush1.msra.mxu0 0.0
    %445 = vmatprep.subr.mxu0 0.0
    %446 = vmatpush1.msra.mxu0 0.0
    %447 = vmatprep.mubr.f32.mxu0 0.0
    %448 = vmatmul.mubr.f32.gmra.mrb[0].mxu0 %v381
    %v449 = vpop.f32.mrb[0].mxu0
    %v450 = vadd.f32 0.0, %v449
    %v451 = vpop.f32.mrb[0].mxu0
    %452 = vdwg.mxu0
    %v453 = vmax.f32 %v450, 0.0
    %v454 = vld [vmem:[%s2] sm:$0xf]
    %vm455 = vcmask 31744
    %v457 = vsel %vm455, %v453, 0
    %vm459 = vcmask 1043456
    %v461 = vsel %vm459, %v454, 0
    %463 = vmatprep.subr.mxu0 0.0
    %464 = vmatpush1.msra.mxu0 %v461
    %465 = vmatprep.subr.mxu0 0.0
    %466 = vmatpush1.msra.mxu0 0.0
    %467 = vmatprep.subr.mxu0 0.0
    %468 = vmatpush1.msra.mxu0 0.0
    %469 = vmatprep.subr.mxu0 0.0
    %470 = vmatpush1.msra.mxu0 0.0
    %471 = vmatprep.subr.mxu0 0.0
    %472 = vmatpush1.msra.mxu0 0.0
    %473 = vmatprep.subr.mxu0 0.0
    %474 = vmatpush1.msra.mxu0 0.0
    %475 = vmatprep.subr.mxu0 0.0
    %476 = vmatpush1.msra.mxu0 0.0
    %477 = vmatprep.subr.mxu0 0.0
    %478 = vmatpush1.msra.mxu0 0.0
    %479 = vmatprep.subr.mxu0 0.0
    %480 = vmatpush1.msra.mxu0 0.0
    %481 = vmatprep.subr.mxu0 0.0
    %482 = vmatpush1.msra.mxu0 0.0
    %483 = vmatprep.subr.mxu0 0.0
    %484 = vmatpush1.msra.mxu0 0.0
    %485 = vmatprep.subr.mxu0 0.0
    %486 = vmatpush1.msra.mxu0 0.0
    %487 = vmatprep.subr.mxu0 0.0
    %488 = vmatpush1.msra.mxu0 0.0
    %489 = vmatprep.subr.mxu0 0.0
    %490 = vmatpush1.msra.mxu0 0.0
    %491 = vmatprep.subr.mxu0 0.0
    %492 = vmatpush1.msra.mxu0 0.0
    %493 = vmatprep.subr.mxu0 0.0
    %494 = vmatpush1.msra.mxu0 0.0
    %495 = vmatprep.subr.mxu0 0.0
    %496 = vmatpush1.msra.mxu0 0.0
    %497 = vmatprep.subr.mxu0 0.0
    %498 = vmatpush1.msra.mxu0 0.0
    %499 = vmatprep.subr.mxu0 0.0
    %500 = vmatpush1.msra.mxu0 0.0
    %501 = vmatprep.subr.mxu0 0.0
    %502 = vmatpush1.msra.mxu0 0.0
    %503 = vmatprep.subr.mxu0 0.0
    %504 = vmatpush1.msra.mxu0 0.0
    %505 = vmatprep.subr.mxu0 0.0
    %506 = vmatpush1.msra.mxu0 0.0
    %507 = vmatprep.subr.mxu0 0.0
    %508 = vmatpush1.msra.mxu0 0.0
    %509 = vmatprep.subr.mxu0 0.0
    %510 = vmatpush1.msra.mxu0 0.0
    %511 = vmatprep.subr.mxu0 0.0
    %512 = vmatpush1.msra.mxu0 0.0
    %513 = vmatprep.subr.mxu0 0.0
    %514 = vmatpush1.msra.mxu0 0.0
    %515 = vmatprep.subr.mxu0 0.0
    %516 = vmatpush1.msra.mxu0 0.0
    %517 = vmatprep.subr.mxu0 0.0
    %518 = vmatpush1.msra.mxu0 0.0
    %519 = vmatprep.subr.mxu0 0.0
    %520 = vmatpush1.msra.mxu0 0.0
    %521 = vmatprep.subr.mxu0 0.0
    %522 = vmatpush1.msra.mxu0 0.0
    %523 = vmatprep.subr.mxu0 0.0
    %524 = vmatpush1.msra.mxu0 0.0
    %525 = vmatprep.subr.mxu0 0.0
    %526 = vmatpush1.msra.mxu0 0.0
    %527 = vmatprep.mubr.f32.mxu0 0.0
    %528 = vmatmul.mubr.f32.gmra.mrb[0].mxu0 %v457
    %v529 = vpop.f32.mrb[0].mxu0
    %v530 = vadd.f32 0.0, %v529
    %v531 = vpop.f32.mrb[0].mxu0
    %532 = vdwg.mxu0
    %v534 = vrot.slane %v530, 2
    %v536 = vadd.f32 %v530, %v534
    %v537 = vsub.f32 0.0, %v536
    %v538 = vmul.f32 %v537, 1.442695
    %v539 = vpow.pop %v538
    %v540 = vadd.f32 %v539, 1.0
    %v541 = vrcp.pop %v540
    %v542 = vmul.f32 1.0, %v541
    %vm543 = vcmask 517120
    %544 = vst.msk [vmem:[#allocation4] sm:$0x3] %vm543, %v542
    // Predicated region
    $region14: #{channel_attention.1} parent=1 // pred_check
      _
    $region15: #{channel_attention.1} parent=1 // pred_check_branch
      %546 = sbr.rel (0) target = $region17
    $region16: #{channel_attention.1} parent=1 // pred_region
      %s548 = ssub.s32 32, 32
      %549 = vsyncadd [#allocation5], %s548
      %s551 = sshll.u32 [#allocation4], 4
      %s552 = int_to_ptr.vmem [resolvable:$true] %s551
      %554 = dma.vmem_to_hbm [thread:$0]  %s552, 32, %s3, [#allocation5]
    $region17: #{channel_attention.1} parent=1 // pred_fallthru
      _
    // Predicated region
    $region18: #{channel_attention.1} parent=1 // pred_check
      _
    $region19: #{channel_attention.1} parent=1 // pred_check_branch
      %556 = sbr.rel (0) target = $region21
    $region20: #{channel_attention.1} parent=1 // pred_region
      %557 = dma.done [#allocation5], 32
    $region21: #{channel_attention.1} parent=1 // pred_fallthru
      _
    %558 = vsyncpa [#allocation5], 1

</llo_original>
